<compile_context>
chip_gen: v5e
topology: v5e:2x2
jax: 0.10.0
libtpu: 0.0.40
codegen_flags: <defaults>
</compile_context>

<pallas_src>
import jax
import jax.numpy as jnp
from jax.experimental import pallas as pl
from jax.experimental.pallas import tpu as pltpu


def _round_up(x: int, m: int) -> int:
    return ((x + m - 1) // m) * m


# ---------------------------------------------------------------------------
# Kernel
# ---------------------------------------------------------------------------
def encoder_kernel(adj_ref, invdeg_ref, feats_ref, self_ref, ws_ref, wn_ref,
                   b_ref, out_ref, acc_ref):
    k = pl.program_id(1)

    @pl.when(k == 0)
    def _():
        # Prologue: zero the neighbor-sum accumulator and pre-compute the
        # self-feature contribution (out_ref is resident across the k axis).
        acc_ref[...] = jnp.zeros_like(acc_ref)
        out_ref[...] = (jnp.dot(self_ref[...], ws_ref[...],
                                preferred_element_type=jnp.float32)
                        + b_ref[...])

    # Partial neighbor-sum for this K tile (raw bf16 edge counts @ bf16 features).
    acc_ref[...] += jnp.dot(adj_ref[...], feats_ref[...],
                            preferred_element_type=jnp.float32)

    @pl.when(k == pl.num_programs(1) - 1)
    def _():
        # Mean aggregation with exact, precomputed 1/deg (zero for isolated rows).
        neigh = (acc_ref[...] * invdeg_ref[...]).astype(wn_ref.dtype)
        h = out_ref[...] + jnp.dot(neigh, wn_ref[...],
                                   preferred_element_type=jnp.float32)
        out_ref[...] = jnp.maximum(h, 0.0)


# ---------------------------------------------------------------------------
# Graph glue (mirrors Encoder.get_neighbors, gcn=False):
#   edge (s, d) adds d to neigh[s] and s to neigh[d]
# ---------------------------------------------------------------------------
def _build_mean_adj(nodes, edge_index, m, n_total, m_p, n_p):
    """Raw neighbor-count matrix [m_p, n_p] (bf16, built directly at padded shape)
    and exact inverse degrees [m_p, 1] (f32)."""
    src, dst = edge_index[0], edge_index[1]
    # Nodes not in `nodes` map to m_p (out of bounds) so mode="drop" discards them.
    node_to_row = jnp.full((n_total,), m_p, dtype=jnp.int32)
    node_to_row = node_to_row.at[nodes].set(jnp.arange(m, dtype=jnp.int32))
    row_s = node_to_row[src]
    row_d = node_to_row[dst]

    # Counts are small non-negative integers -> exact in bf16 (up to 256).
    adj = jnp.zeros((m_p, n_p), dtype=jnp.bfloat16)
    adj = adj.at[row_s, dst].add(1.0, mode="drop")
    adj = adj.at[row_d, src].add(1.0, mode="drop")

    # Degrees from a 1-D scatter (exact f32), avoiding a reduce over the big matrix.
    deg = jnp.zeros((m_p,), jnp.float32)
    deg = deg.at[row_s].add(1.0, mode="drop")
    deg = deg.at[row_d].add(1.0, mode="drop")
    inv_deg = jnp.where(deg > 0.0, 1.0 / jnp.maximum(deg, 1.0), 0.0)
    return adj, inv_deg.reshape(m_p, 1)


def _pad2d(x, rows, cols, dtype):
    x = x.astype(dtype)
    r, c = x.shape
    if (r, c) == (rows, cols):
        return x                       # already aligned: no padding copy
    return jnp.zeros((rows, cols), dtype).at[:r, :c].set(x)


# ---------------------------------------------------------------------------
# Generation-aware tile selection
# ---------------------------------------------------------------------------
def _pick_tiles(m_al, n_al, d_p, e_p, budget):
    """Largest (TM, TK) whose double-buffered VMEM footprint fits `budget`.
    Prefers TK == n_al (features stay resident -> no per-row-tile re-stream) and
    caps TM so grid dim 0 has >= 2 row tiles (keeps both v7x TensorCores busy)."""
    def footprint(tm, tk):
        b = 2 * tm * tk * 2            # adjacency (bf16, double-buffered)
        b += 2 * tk * d_p * 2          # features (bf16)
        b += 2 * tm * d_p * 2          # self feats (bf16)
        b += 2 * tm * 128 * 4          # inv_deg (f32, lane-padded)
        b += 2 * 2 * d_p * e_p * 2     # W_self + W_neigh (bf16)
        b += 2 * 8 * e_p * 4           # bias (f32, sublane-padded)
        b += 2 * tm * e_p * 4          # output (f32)
        b += tm * d_p * 4              # accumulator scratch (f32)
        return b

    tm_cap = m_al if m_al < 256 else max(128, _round_up(m_al // 2, 128))
    best, best_key = (128, 128), None
    for tm_c in (2048, 1024, 512, 256, 128):
        tm = min(tm_c, tm_cap)
        for tk_c in (8192, 4096, 2048, 1024, 512, 256, 128):
            tk = min(tk_c, n_al)
            if footprint(tm, tk) > budget:
                continue
            key = (tk == n_al, tm, tk)   # resident features first, then tile size
            if best_key is None or key > best_key:
                best, best_key = (tm, tk), key
    return best


# ---------------------------------------------------------------------------
# Wrapper
# ---------------------------------------------------------------------------
def encoder_forward(nodes, features, edge_index, weight, bias):
    """Pallas Encoder.forward (gcn=False).

    nodes:      [M] int32, features: [N, input_dim] f32, edge_index: [2, E] i32
    weight:     [embed_dim, 2*input_dim] f32 (torch Linear layout), bias: [embed_dim]
    """
    n_total, input_dim = features.shape
    embed_dim = weight.shape[0]
    m = nodes.shape[0]

    f32, bf16 = jnp.float32, jnp.bfloat16
    d_p = _round_up(input_dim, 128)
    e_p = _round_up(embed_dim, 128)
    m_al = _round_up(m, 128)
    n_al = _round_up(n_total, 128)

    # Per-generation VMEM budget (v7x: 64 MiB physical -> ~48 MiB; v5e/v6e: 128 MiB
    # -> ~96 MiB), used both for tile selection and the compiler limit.
    try:
        info = pltpu.get_tpu_info()
        vmem_cap = int(getattr(info, "vmem_capacity_bytes", 64 * 1024 * 1024))
    except Exception:
        vmem_cap = 64 * 1024 * 1024
    vmem_budget = (vmem_cap * 3) // 4

    TM, TK = _pick_tiles(m_al, n_al, d_p, e_p, vmem_budget)
    m_p = _round_up(m_al, TM)
    n_p = _round_up(n_al, TK)

    # --- glue (same jit as the kernel so the gathers/scatters fuse) ---
    adj_p, inv_deg_p = _build_mean_adj(nodes, edge_index, m, n_total, m_p, n_p)
    feats_p = _pad2d(features, n_p, d_p, bf16)
    self_p = _pad2d(features[nodes], m_p, d_p, bf16)
    ws_p = _pad2d(weight[:, :input_dim].T, d_p, e_p, bf16)
    wn_p = _pad2d(weight[:, input_dim:].T, d_p, e_p, bf16)
    b_p = _pad2d(bias.reshape(1, -1), 1, e_p, f32)
    # TODO(synk): MeanAggregator's num_sample neighbor subsampling (random.sample)
    #             is not modeled; full mean over all neighbors is used.
    # TODO(synk): gcn=True path (Linear(input_dim -> embed_dim), no concat) not implemented.
    # TODO(synk): for realistically sparse graphs, replace the dense adj @ features
    #             matmul with a scalar-prefetch CSR gather-and-accumulate (O(E*D) bytes).
    # TODO(synk): on v7x, fp8(e4m3) adjacency (counts <= 2) would quarter the dominant
    #             HBM stream; kept bf16 so v5e/v6e use the same path.

    grid = (m_p // TM, n_p // TK)

    flops = 2 * m_p * n_p * d_p + 4 * m_p * d_p * e_p
    bytes_accessed = (m_p * n_p * 2                      # adjacency (bf16)
                      + (m_p // TM) * n_p * d_p * 2      # features, re-read per row tile
                      + m_p * d_p * 2                    # self feats
                      + m_p * 4                          # inv_deg
                      + 2 * d_p * e_p * 2 + e_p * 4      # weights + bias
                      + m_p * e_p * 4)                   # output

    out_p = pl.pallas_call(
        encoder_kernel,
        out_shape=jax.ShapeDtypeStruct((m_p, e_p), f32),
        grid_spec=pltpu.PrefetchScalarGridSpec(
            num_scalar_prefetch=0,
            grid=grid,
            in_specs=[
                pl.BlockSpec((TM, TK), lambda i, k: (i, k)),    # adjacency counts (bf16)
                pl.BlockSpec((TM, 1), lambda i, k: (i, 0)),     # inverse degrees
                pl.BlockSpec((TK, d_p), lambda i, k: (k, 0)),   # features (bf16)
                pl.BlockSpec((TM, d_p), lambda i, k: (i, 0)),   # self feats (bf16)
                pl.BlockSpec((d_p, e_p), lambda i, k: (0, 0)),  # W_self (bf16)
                pl.BlockSpec((d_p, e_p), lambda i, k: (0, 0)),  # W_neigh (bf16)
                pl.BlockSpec((1, e_p), lambda i, k: (0, 0)),    # bias
            ],
            out_specs=pl.BlockSpec((TM, e_p), lambda i, k: (i, 0)),
            scratch_shapes=[pltpu.VMEM((TM, d_p), jnp.float32)],
        ),
        compiler_params=pltpu.CompilerParams(
            dimension_semantics=("parallel", "arbitrary"),
            vmem_limit_bytes=int(vmem_budget),
        ),
        cost_estimate=pl.CostEstimate(
            flops=flops, transcendentals=0, bytes_accessed=bytes_accessed),
    )(adj_p, inv_deg_p, feats_p, self_p, ws_p, wn_p, b_p)

    return out_p[:m, :embed_dim]


# ---------------------------------------------------------------------------
# Pure-JAX reference (exact f32, mirrors the PyTorch semantics)
# ---------------------------------------------------------------------------
def reference_forward(nodes, features, edge_index, weight, bias):
    n_total = features.shape[0]
    m = nodes.shape[0]
    src, dst = edge_index[0], edge_index[1]
    node_to_row = jnp.full((n_total,), m, dtype=jnp.int32)
    node_to_row = node_to_row.at[nodes].set(jnp.arange(m, dtype=jnp.int32))
    adj = jnp.zeros((m, n_total), jnp.float32)
    adj = adj.at[node_to_row[src], dst].add(1.0, mode="drop")
    adj = adj.at[node_to_row[dst], src].add(1.0, mode="drop")
    deg = adj.sum(axis=1, keepdims=True)
    neigh = jnp.where(deg > 0.0, (adj @ features) / jnp.maximum(deg, 1.0), 0.0)
    combined = jnp.concatenate([features[nodes], neigh], axis=1)
    return jax.nn.relu(combined @ weight.T + bias)


if __name__ == "__main__":
    key = jax.random.PRNGKey(0)
    k_feat, k_edge, k_w, k_b = jax.random.split(key, 4)

    n_total = 16          # total nodes in the graph
    input_dim = 32        # per-node feature dim
    embed_dim = 32        # Encoder embed_dim
    num_edges = 40

    features = jax.random.normal(k_feat, (n_total, input_dim), dtype=jnp.float32)
    edge_index = jax.random.randint(k_edge, (2, num_edges), 0, n_total,
                                    dtype=jnp.int32)
    nodes = jnp.arange(n_total, dtype=jnp.int32)

    # Deterministic Linear(2*input_dim -> embed_dim) parameters (gcn=False).
    bound = 1.0 / jnp.sqrt(2.0 * input_dim)
    weight = jax.random.uniform(k_w, (embed_dim, 2 * input_dim),
                                minval=-bound, maxval=bound, dtype=jnp.float32)
    bias = jax.random.uniform(k_b, (embed_dim,),
                              minval=-bound, maxval=bound, dtype=jnp.float32)

    fwd = jax.jit(encoder_forward)
    out = jax.block_until_ready(fwd(nodes, features, edge_index, weight, bias))

    ref = reference_forward(nodes, features, edge_index, weight, bias)
    assert out.shape == (n_total, embed_dim)
    # Tolerance reflects bf16 storage of features/weights (adjacency counts are
    # exact in bf16; the mean uses an exact precomputed 1/deg).
    max_err = float(jnp.max(jnp.abs(out - ref)))
    assert jnp.allclose(out, ref, atol=5e-2, rtol=5e-2), max_err
    print("KERNEL_OK")
</pallas_src>

<mosaic_0001>
module attributes {stable_mosaic.version = 11 : i64} {
  func.func @encoder_kernel(%arg0: i32, %arg1: i32, %arg2: memref<128x128xbf16, #tpu.memory_space<vmem>>, %arg3: memref<128x1xf32, #tpu.memory_space<vmem>>, %arg4: memref<128x128xbf16, #tpu.memory_space<vmem>>, %arg5: memref<128x128xbf16, #tpu.memory_space<vmem>>, %arg6: memref<128x128xbf16, #tpu.memory_space<vmem>>, %arg7: memref<128x128xbf16, #tpu.memory_space<vmem>>, %arg8: memref<1x128xf32, #tpu.memory_space<vmem>>, %arg9: memref<128x128xf32, #tpu.memory_space<vmem>>, %arg10: memref<128x128xf32, #tpu.memory_space<vmem>>) attributes {dimension_semantics = [#tpu.dimension_semantics<parallel>, #tpu.dimension_semantics<arbitrary>], iteration_bounds = array<i64: 1, 1>, scalar_prefetch = 0 : i64, scratch_operands = 1 : i64, tpu.core_type = #tpu.core_type<tc>, window_params = [{transform_indices = @transform_0, window_bounds = array<i64: 128, 128>}, {transform_indices = @transform_1, window_bounds = array<i64: 128, 1>}, {transform_indices = @transform_2, window_bounds = array<i64: 128, 128>}, {transform_indices = @transform_3, window_bounds = array<i64: 128, 128>}, {pipeline_mode = #tpu.pipeline_mode<synchronous>, transform_indices = @transform_4, window_bounds = array<i64: 128, 128>}, {pipeline_mode = #tpu.pipeline_mode<synchronous>, transform_indices = @transform_5, window_bounds = array<i64: 128, 128>}, {pipeline_mode = #tpu.pipeline_mode<synchronous>, transform_indices = @transform_6, window_bounds = array<i64: 1, 128>}, {transform_indices = @transform_7, window_bounds = array<i64: 128, 128>}]} {
    %c0_i32 = arith.constant 0 : i32
    %0 = arith.cmpi eq, %arg1, %c0_i32 : i32
    %1 = arith.extui %0 : i1 to i32
    %c0_i32_0 = arith.constant 0 : i32
    %2 = arith.cmpi ne, %1, %c0_i32_0 : i32
    scf.if %2 {
      %cst_10 = arith.constant 0.000000e+00 : f32
      %12 = vector.broadcast %cst_10 : f32 to vector<128x128xf32>
      %c0_11 = arith.constant 0 : index
      %c0_12 = arith.constant 0 : index
      %13 = vector.load %arg10[%c0_11, %c0_12] : memref<128x128xf32, #tpu.memory_space<vmem>>, vector<128x128xf32>
      tpu.vector_store %arg10[%c0_11, %c0_12], %12 {strides = array<i32>} : memref<128x128xf32, #tpu.memory_space<vmem>>, vector<128x128xf32>,
      %c0_13 = arith.constant 0 : index
      %c0_14 = arith.constant 0 : index
      %14 = vector.load %arg5[%c0_13, %c0_14] : memref<128x128xbf16, #tpu.memory_space<vmem>>, vector<128x128xbf16>
      %c0_15 = arith.constant 0 : index
      %c0_16 = arith.constant 0 : index
      %15 = vector.load %arg6[%c0_15, %c0_16] : memref<128x128xbf16, #tpu.memory_space<vmem>>, vector<128x128xbf16>
      %cst_17 = arith.constant dense<0.000000e+00> : vector<128x128xf32>
      %16 = tpu.matmul %14, %15, %cst_17 {dimension_numbers = #tpu.dot_dimension_numbers<[1], [0], [0], [1], [0, 0, 1, 1], [], []>} : vector<128x128xbf16>, vector<128x128xbf16>, vector<128x128xf32> -> vector<128x128xf32>
      %c0_18 = arith.constant 0 : index
      %c0_19 = arith.constant 0 : index
      %17 = vector.load %arg8[%c0_18, %c0_19] : memref<1x128xf32, #tpu.memory_space<vmem>>, vector<1x128xf32>
      %18 = vector.broadcast %17 : vector<1x128xf32> to vector<128x128xf32>
      %19 = arith.addf %16, %18 : vector<128x128xf32>
      %c0_20 = arith.constant 0 : index
      %c0_21 = arith.constant 0 : index
      %20 = vector.load %arg9[%c0_20, %c0_21] : memref<128x128xf32, #tpu.memory_space<vmem>>, vector<128x128xf32>
      tpu.vector_store %arg9[%c0_20, %c0_21], %19 {strides = array<i32>} : memref<128x128xf32, #tpu.memory_space<vmem>>, vector<128x128xf32>,
    } else {
    }
    %c0 = arith.constant 0 : index
    %c0_1 = arith.constant 0 : index
    %3 = vector.load %arg10[%c0, %c0_1] : memref<128x128xf32, #tpu.memory_space<vmem>>, vector<128x128xf32>
    %c0_2 = arith.constant 0 : index
    %c0_3 = arith.constant 0 : index
    %4 = vector.load %arg2[%c0_2, %c0_3] : memref<128x128xbf16, #tpu.memory_space<vmem>>, vector<128x128xbf16>
    %c0_4 = arith.constant 0 : index
    %c0_5 = arith.constant 0 : index
    %5 = vector.load %arg4[%c0_4, %c0_5] : memref<128x128xbf16, #tpu.memory_space<vmem>>, vector<128x128xbf16>
    %cst = arith.constant dense<0.000000e+00> : vector<128x128xf32>
    %6 = tpu.matmul %4, %5, %cst {dimension_numbers = #tpu.dot_dimension_numbers<[1], [0], [0], [1], [0, 0, 1, 1], [], []>} : vector<128x128xbf16>, vector<128x128xbf16>, vector<128x128xf32> -> vector<128x128xf32>
    %7 = arith.addf %3, %6 : vector<128x128xf32>
    %c0_6 = arith.constant 0 : index
    %c0_7 = arith.constant 0 : index
    %8 = vector.load %arg10[%c0_6, %c0_7] : memref<128x128xf32, #tpu.memory_space<vmem>>, vector<128x128xf32>
    tpu.vector_store %arg10[%c0_6, %c0_7], %7 {strides = array<i32>} : memref<128x128xf32, #tpu.memory_space<vmem>>, vector<128x128xf32>,
    %c0_i32_8 = arith.constant 0 : i32
    %9 = arith.cmpi eq, %arg1, %c0_i32_8 : i32
    %10 = arith.extui %9 : i1 to i32
    %c0_i32_9 = arith.constant 0 : i32
    %11 = arith.cmpi ne, %10, %c0_i32_9 : i32
    scf.if %11 {
      %c0_10 = arith.constant 0 : index
      %c0_11 = arith.constant 0 : index
      %12 = vector.load %arg10[%c0_10, %c0_11] : memref<128x128xf32, #tpu.memory_space<vmem>>, vector<128x128xf32>
      %c0_12 = arith.constant 0 : index
      %c0_13 = arith.constant 0 : index
      %13 = vector.load %arg3[%c0_12, %c0_13] : memref<128x1xf32, #tpu.memory_space<vmem>>, vector<128x1xf32>
      %14 = vector.broadcast %13 : vector<128x1xf32> to vector<128x128xf32>
      %15 = arith.mulf %12, %14 : vector<128x128xf32>
      %16 = arith.truncf %15 : vector<128x128xf32> to vector<128x128xbf16>
      %c0_14 = arith.constant 0 : index
      %c0_15 = arith.constant 0 : index
      %17 = vector.load %arg9[%c0_14, %c0_15] : memref<128x128xf32, #tpu.memory_space<vmem>>, vector<128x128xf32>
      %c0_16 = arith.constant 0 : index
      %c0_17 = arith.constant 0 : index
      %18 = vector.load %arg7[%c0_16, %c0_17] : memref<128x128xbf16, #tpu.memory_space<vmem>>, vector<128x128xbf16>
      %cst_18 = arith.constant dense<0.000000e+00> : vector<128x128xf32>
      %19 = tpu.matmul %16, %18, %cst_18 {dimension_numbers = #tpu.dot_dimension_numbers<[1], [0], [0], [1], [0, 0, 1, 1], [], []>} : vector<128x128xbf16>, vector<128x128xbf16>, vector<128x128xf32> -> vector<128x128xf32>
      %20 = arith.addf %17, %19 : vector<128x128xf32>
      %cst_19 = arith.constant 0.000000e+00 : f32
      %21 = vector.broadcast %cst_19 : f32 to vector<128x128xf32>
      %22 = arith.maximumf %20, %21 : vector<128x128xf32>
      %c0_20 = arith.constant 0 : index
      %c0_21 = arith.constant 0 : index
      %23 = vector.load %arg9[%c0_20, %c0_21] : memref<128x128xf32, #tpu.memory_space<vmem>>, vector<128x128xf32>
      tpu.vector_store %arg9[%c0_20, %c0_21], %22 {strides = array<i32>} : memref<128x128xf32, #tpu.memory_space<vmem>>, vector<128x128xf32>,
    } else {
    }
    return
  }
  func.func @transform_0(%arg0: i32, %arg1: i32) -> (i32, i32) {
    %c0_i32 = arith.constant 0 : i32
    return %arg0, %arg1 : i32, i32
  }
  func.func @transform_1(%arg0: i32, %arg1: i32) -> (i32, i32) {
    %c0_i32 = arith.constant 0 : i32
    %c0_i32_0 = arith.constant 0 : i32
    return %arg0, %c0_i32 : i32, i32
  }
  func.func @transform_2(%arg0: i32, %arg1: i32) -> (i32, i32) {
    %c0_i32 = arith.constant 0 : i32
    %c0_i32_0 = arith.constant 0 : i32
    return %arg1, %c0_i32 : i32, i32
  }
  func.func @transform_3(%arg0: i32, %arg1: i32) -> (i32, i32) {
    %c0_i32 = arith.constant 0 : i32
    %c0_i32_0 = arith.constant 0 : i32
    return %arg0, %c0_i32 : i32, i32
  }
  func.func @transform_4(%arg0: i32, %arg1: i32) -> (i32, i32) {
    %c0_i32 = arith.constant 0 : i32
    %c0_i32_0 = arith.constant 0 : i32
    %c0_i32_1 = arith.constant 0 : i32
    return %c0_i32, %c0_i32_0 : i32, i32
  }
  func.func @transform_5(%arg0: i32, %arg1: i32) -> (i32, i32) {
    %c0_i32 = arith.constant 0 : i32
    %c0_i32_0 = arith.constant 0 : i32
    %c0_i32_1 = arith.constant 0 : i32
    return %c0_i32, %c0_i32_0 : i32, i32
  }
  func.func @transform_6(%arg0: i32, %arg1: i32) -> (i32, i32) {
    %c0_i32 = arith.constant 0 : i32
    %c0_i32_0 = arith.constant 0 : i32
    %c0_i32_1 = arith.constant 0 : i32
    return %c0_i32, %c0_i32_0 : i32, i32
  }
  func.func @transform_7(%arg0: i32, %arg1: i32) -> (i32, i32) {
    %c0_i32 = arith.constant 0 : i32
    %c0_i32_0 = arith.constant 0 : i32
    return %arg0, %c0_i32 : i32, i32
  }
}

</mosaic_0001>

<llo_original>
// kernel: encoder_forward.1
$region0: #{encoder_forward.1}
  #allocation0 [shape = 'u32[]', space=smem, size = 0x4, offset = 0x4, fixed_abs, tag = 'smem constant byte address 0x4 - core index']
  #allocation1 [shape = 'u32[72,128]{1,0:T(1,128)}', space=vmem, size = 0x9000, scoped, tag = 'internal scratch']
  #allocation2 [shape = 'f32[128,128]{1,0:T(8,128)}', space=vmem, size = 0x10000, scoped, tag = 'scratch operand']
  %s0 = inlined_call_operand.vmem [shape: bf16[128,128], index: 0, kind: input, shape index: {}]
  %s1 = inlined_call_operand.vmem [shape: f32[128,1], index: 1, kind: input, shape index: {}]
  %s2 = inlined_call_operand.vmem [shape: bf16[128,128], index: 2, kind: input, shape index: {}]
  %s3 = inlined_call_operand.vmem [shape: bf16[128,128], index: 3, kind: input, shape index: {}]
  %s4 = inlined_call_operand.vmem [shape: bf16[128,128], index: 4, kind: input, shape index: {}]
  %s5 = inlined_call_operand.vmem [shape: bf16[128,128], index: 5, kind: input, shape index: {}]
  %s6 = inlined_call_operand.vmem [shape: f32[1,128], index: 6, kind: input, shape index: {}]
  %s7 = inlined_call_operand.vmem [shape: f32[128,128], index: 7, kind: output, shape index: {}]
  %s8 = sld [smem:[#allocation0]]
  $region46: #{encoder_forward.1} parent=0
    _
  %s10 = ssub.s32 1, %s8
  %s11 = scalar_select 0, %s10, %s8
  // Predicated region
  $region2: #{encoder_forward.1} parent=0 // pred_check
    _
  $region3: #{encoder_forward.1} parent=0 // pred_check_branch
    %13 = sbr.rel (0) target = $region5
  $region4: #{encoder_forward.1} parent=0 // pred_region
    _
  $region5: #{encoder_forward.1} parent=0 // pred_fallthru
    _
  // Predicated region
  $region6: #{encoder_forward.1} parent=0 // pred_check
    _
  $region7: #{encoder_forward.1} parent=0 // pred_check_branch
    %15 = sbr.rel (0) target = $region9
  $region8: #{encoder_forward.1} parent=0 // pred_region
    _
  $region9: #{encoder_forward.1} parent=0 // pred_fallthru
    _
  // Predicated region
  $region10: #{encoder_forward.1} parent=0 // pred_check
    _
  $region11: #{encoder_forward.1} parent=0 // pred_check_branch
    %17 = sbr.rel (0) target = $region13
  $region12: #{encoder_forward.1} parent=0 // pred_region
    _
  $region13: #{encoder_forward.1} parent=0 // pred_fallthru
    _
  // Predicated region
  $region14: #{encoder_forward.1} parent=0 // pred_check
    _
  $region15: #{encoder_forward.1} parent=0 // pred_check_branch
    %19 = sbr.rel (0) target = $region17
  $region16: #{encoder_forward.1} parent=0 // pred_region
    _
  $region17: #{encoder_forward.1} parent=0 // pred_fallthru
    _
  // Predicated region
  $region18: #{encoder_forward.1} parent=0 // pred_check
    _
  $region19: #{encoder_forward.1} parent=0 // pred_check_branch
    %21 = sbr.rel (0) target = $region21
  $region20: #{encoder_forward.1} parent=0 // pred_region
    _
  $region21: #{encoder_forward.1} parent=0 // pred_fallthru
    _
  // Predicated region
  $region22: #{encoder_forward.1} parent=0 // pred_check
    _
  $region23: #{encoder_forward.1} parent=0 // pred_check_branch
    %23 = sbr.rel (0) target = $region25
  $region24: #{encoder_forward.1} parent=0 // pred_region
    _
  $region25: #{encoder_forward.1} parent=0 // pred_fallthru
    _
  // Predicated region
  $region26: #{encoder_forward.1} parent=0 // pred_check
    _
  $region27: #{encoder_forward.1} parent=0 // pred_check_branch
    %25 = sbr.rel (0) target = $region29
  $region28: #{encoder_forward.1} parent=0 // pred_region
    _
  $region29: #{encoder_forward.1} parent=0 // pred_fallthru
    _
  %p26 = scmp.eq.s32.totalorder 0, 0
  // Predicated region
  $region30: #{encoder_forward.1} parent=0 // pred_check
    %p27 = pneg %p26
  $region31: #{encoder_forward.1} parent=0 // pred_check_branch
    %29 = sbr.rel (%p27) target = $region33
  $region32: #{encoder_forward.1} parent=0 // pred_region
    %30 = vst [vmem:[#allocation2] sm:$0xff] 0.0
    %31 = vst [vmem:[#allocation2 + $0x8] sm:$0xff] 0.0
    %32 = vst [vmem:[#allocation2 + $0x10] sm:$0xff] 0.0
    %33 = vst [vmem:[#allocation2 + $0x18] sm:$0xff] 0.0
    %34 = vst [vmem:[#allocation2 + $0x20] sm:$0xff] 0.0
    %35 = vst [vmem:[#allocation2 + $0x28] sm:$0xff] 0.0
    %36 = vst [vmem:[#allocation2 + $0x30] sm:$0xff] 0.0
    %37 = vst [vmem:[#allocation2 + $0x38] sm:$0xff] 0.0
    %38 = vst [vmem:[#allocation2 + $0x40] sm:$0xff] 0.0
    %39 = vst [vmem:[#allocation2 + $0x48] sm:$0xff] 0.0
    %40 = vst [vmem:[#allocation2 + $0x50] sm:$0xff] 0.0
    %41 = vst [vmem:[#allocation2 + $0x58] sm:$0xff] 0.0
    %42 = vst [vmem:[#allocation2 + $0x60] sm:$0xff] 0.0
    %43 = vst [vmem:[#allocation2 + $0x68] sm:$0xff] 0.0
    %44 = vst [vmem:[#allocation2 + $0x70] sm:$0xff] 0.0
    %45 = vst [vmem:[#allocation2 + $0x78] sm:$0xff] 0.0
    %v46 = vld [vmem:[%s3] sm:$0xf]
    %v47 = vld [vmem:[%s3 + $0x4] sm:$0xf]
    %v48 = vld [vmem:[%s3 + $0x8] sm:$0xf]
    %v49 = vld [vmem:[%s3 + $0xc] sm:$0xf]
    %v50 = vld [vmem:[%s3 + $0x10] sm:$0xf]
    %v51 = vld [vmem:[%s3 + $0x14] sm:$0xf]
    %v52 = vld [vmem:[%s3 + $0x18] sm:$0xf]
    %v53 = vld [vmem:[%s3 + $0x1c] sm:$0xf]
    %v54 = vld [vmem:[%s3 + $0x20] sm:$0xf]
    %v55 = vld [vmem:[%s3 + $0x24] sm:$0xf]
    %v56 = vld [vmem:[%s3 + $0x28] sm:$0xf]
    %v57 = vld [vmem:[%s3 + $0x2c] sm:$0xf]
    %v58 = vld [vmem:[%s3 + $0x30] sm:$0xf]
    %v59 = vld [vmem:[%s3 + $0x34] sm:$0xf]
    %v60 = vld [vmem:[%s3 + $0x38] sm:$0xf]
    %v61 = vld [vmem:[%s3 + $0x3c] sm:$0xf]
    %v62 = vld [vmem:[%s4] sm:$0xf]
    %v63 = vld [vmem:[%s4 + $0x4] sm:$0xf]
    %v64 = vld [vmem:[%s4 + $0x8] sm:$0xf]
    %v65 = vld [vmem:[%s4 + $0xc] sm:$0xf]
    %v66 = vld [vmem:[%s4 + $0x10] sm:$0xf]
    %v67 = vld [vmem:[%s4 + $0x14] sm:$0xf]
    %v68 = vld [vmem:[%s4 + $0x18] sm:$0xf]
    %v69 = vld [vmem:[%s4 + $0x1c] sm:$0xf]
    %v70 = vld [vmem:[%s4 + $0x20] sm:$0xf]
    %v71 = vld [vmem:[%s4 + $0x24] sm:$0xf]
    %v72 = vld [vmem:[%s4 + $0x28] sm:$0xf]
    %v73 = vld [vmem:[%s4 + $0x2c] sm:$0xf]
    %v74 = vld [vmem:[%s4 + $0x30] sm:$0xf]
    %v75 = vld [vmem:[%s4 + $0x34] sm:$0xf]
    %v76 = vld [vmem:[%s4 + $0x38] sm:$0xf]
    %v77 = vld [vmem:[%s4 + $0x3c] sm:$0xf]
    %v78 = vld [vmem:[%s6] sm:$0x1]
    %v80 = vperm.slane %v78, 0
    %v98 = vunpack.c.l.b16 %v46
    %v99 = vunpack.c.l.b16 %v47
    %v100 = vunpack.c.l.b16 %v48
    %v101 = vunpack.c.l.b16 %v49
    %v102 = vunpack.c.l.b16 %v50
    %v103 = vunpack.c.l.b16 %v51
    %v104 = vunpack.c.l.b16 %v52
    %v105 = vunpack.c.l.b16 %v53
    %v106 = vunpack.c.l.b16 %v54
    %v107 = vunpack.c.l.b16 %v55
    %v108 = vunpack.c.l.b16 %v56
    %v109 = vunpack.c.l.b16 %v57
    %v110 = vunpack.c.l.b16 %v58
    %v111 = vunpack.c.l.b16 %v59
    %v112 = vunpack.c.l.b16 %v60
    %v113 = vunpack.c.l.b16 %v61
    %v114 = vpack.c.b16 %v99, %v98
    %v115 = vpack.c.b16 %v101, %v100
    %v116 = vpack.c.b16 %v103, %v102
    %v117 = vpack.c.b16 %v105, %v104
    %v118 = vpack.c.b16 %v107, %v106
    %v119 = vpack.c.b16 %v109, %v108
    %v120 = vpack.c.b16 %v111, %v110
    %v121 = vpack.c.b16 %v113, %v112
    %v146 = vunpack.c.l.b16 %v62
    %v147 = vunpack.c.l.b16 %v63
    %v148 = vunpack.c.l.b16 %v64
    %v149 = vunpack.c.l.b16 %v65
    %v150 = vunpack.c.l.b16 %v66
    %v151 = vunpack.c.l.b16 %v67
    %v152 = vunpack.c.l.b16 %v68
    %v153 = vunpack.c.l.b16 %v69
    %v154 = vunpack.c.l.b16 %v70
    %v155 = vunpack.c.l.b16 %v71
    %v156 = vunpack.c.l.b16 %v72
    %v157 = vunpack.c.l.b16 %v73
    %v158 = vunpack.c.l.b16 %v74
    %v159 = vunpack.c.l.b16 %v75
    %v160 = vunpack.c.l.b16 %v76
    %v161 = vunpack.c.l.b16 %v77
    %v162 = vpack.c.b16 %v147, %v146
    %v163 = vpack.c.b16 %v149, %v148
    %v164 = vpack.c.b16 %v151, %v150
    %v165 = vpack.c.b16 %v153, %v152
    %v166 = vpack.c.b16 %v155, %v154
    %v167 = vpack.c.b16 %v157, %v156
    %v168 = vpack.c.b16 %v159, %v158
    %v169 = vpack.c.b16 %v161, %v160
    %178 = vmatpush.bf16.msra.mxu0 %v169
    %179 = vmatpush.bf16.msra.mxu0 %v168
    %180 = vmatpush.bf16.msra.mxu0 %v167
    %181 = vmatpush.bf16.msra.mxu0 %v166
    %182 = vmatpush.bf16.msra.mxu0 %v165
    %183 = vmatpush.bf16.msra.mxu0 %v164
    %184 = vmatpush.bf16.msra.mxu0 %v163
    %185 = vmatpush.bf16.msra.mxu0 %v162
    %186 = vmatmul.bf16.gmra.mxu0 %v114
    %v187 = vpop.f32.mrf.mxu0
    %v188 = vadd.f32 %v80, %v187
    %v189 = vpop.f32.mrf.mxu0
    %v190 = vadd.f32 %v80, %v189
    %191 = vmatmul.bf16.gmra.mxu0 %v115
    %v192 = vpop.f32.mrf.mxu0
    %v193 = vadd.f32 %v80, %v192
    %v194 = vpop.f32.mrf.mxu0
    %v195 = vadd.f32 %v80, %v194
    %196 = vmatmul.bf16.gmra.mxu0 %v116
    %v197 = vpop.f32.mrf.mxu0
    %v198 = vadd.f32 %v80, %v197
    %v199 = vpop.f32.mrf.mxu0
    %v200 = vadd.f32 %v80, %v199
    %201 = vmatmul.bf16.gmra.mxu0 %v117
    %v202 = vpop.f32.mrf.mxu0
    %v203 = vadd.f32 %v80, %v202
    %v204 = vpop.f32.mrf.mxu0
    %v205 = vadd.f32 %v80, %v204
    %206 = vmatmul.bf16.gmra.mxu0 %v118
    %v207 = vpop.f32.mrf.mxu0
    %v208 = vadd.f32 %v80, %v207
    %v209 = vpop.f32.mrf.mxu0
    %v210 = vadd.f32 %v80, %v209
    %211 = vmatmul.bf16.gmra.mxu0 %v119
    %v212 = vpop.f32.mrf.mxu0
    %v213 = vadd.f32 %v80, %v212
    %v214 = vpop.f32.mrf.mxu0
    %v215 = vadd.f32 %v80, %v214
    %216 = vmatmul.bf16.gmra.mxu0 %v120
    %v217 = vpop.f32.mrf.mxu0
    %v218 = vadd.f32 %v80, %v217
    %v219 = vpop.f32.mrf.mxu0
    %v220 = vadd.f32 %v80, %v219
    %221 = vmatmul.bf16.gmra.mxu0 %v121
    %v222 = vpop.f32.mrf.mxu0
    %v223 = vadd.f32 %v80, %v222
    %v224 = vpop.f32.mrf.mxu0
    %v225 = vadd.f32 %v80, %v224
    %226 = vdwg.mxu0
    %227 = vst [vmem:[%s7] sm:$0xff] %v188
    %228 = vst [vmem:[%s7 + $0x8] sm:$0xff] %v190
    %229 = vst [vmem:[%s7 + $0x10] sm:$0xff] %v193
    %230 = vst [vmem:[%s7 + $0x18] sm:$0xff] %v195
    %231 = vst [vmem:[%s7 + $0x20] sm:$0xff] %v198
    %232 = vst [vmem:[%s7 + $0x28] sm:$0xff] %v200
    %233 = vst [vmem:[%s7 + $0x30] sm:$0xff] %v203
    %234 = vst [vmem:[%s7 + $0x38] sm:$0xff] %v205
    %235 = vst [vmem:[%s7 + $0x40] sm:$0xff] %v208
    %236 = vst [vmem:[%s7 + $0x48] sm:$0xff] %v210
    %237 = vst [vmem:[%s7 + $0x50] sm:$0xff] %v213
    %238 = vst [vmem:[%s7 + $0x58] sm:$0xff] %v215
    %239 = vst [vmem:[%s7 + $0x60] sm:$0xff] %v218
    %240 = vst [vmem:[%s7 + $0x68] sm:$0xff] %v220
    %241 = vst [vmem:[%s7 + $0x70] sm:$0xff] %v223
    %242 = vst [vmem:[%s7 + $0x78] sm:$0xff] %v225
  $region33: #{encoder_forward.1} parent=0 // pred_fallthru
    _
  %v243 = vld [vmem:[#allocation2] sm:$0xff]
  %v244 = vld [vmem:[#allocation2 + $0x8] sm:$0xff]
  %v245 = vld [vmem:[#allocation2 + $0x10] sm:$0xff]
  %v246 = vld [vmem:[#allocation2 + $0x18] sm:$0xff]
  %v247 = vld [vmem:[#allocation2 + $0x20] sm:$0xff]
  %v248 = vld [vmem:[#allocation2 + $0x28] sm:$0xff]
  %v249 = vld [vmem:[#allocation2 + $0x30] sm:$0xff]
  %v250 = vld [vmem:[#allocation2 + $0x38] sm:$0xff]
  %v251 = vld [vmem:[#allocation2 + $0x40] sm:$0xff]
  %v252 = vld [vmem:[#allocation2 + $0x48] sm:$0xff]
  %v253 = vld [vmem:[#allocation2 + $0x50] sm:$0xff]
  %v254 = vld [vmem:[#allocation2 + $0x58] sm:$0xff]
  %v255 = vld [vmem:[#allocation2 + $0x60] sm:$0xff]
  %v256 = vld [vmem:[#allocation2 + $0x68] sm:$0xff]
  %v257 = vld [vmem:[#allocation2 + $0x70] sm:$0xff]
  %v258 = vld [vmem:[#allocation2 + $0x78] sm:$0xff]
  %v259 = vld [vmem:[%s0] sm:$0xf]
  %v260 = vld [vmem:[%s0 + $0x4] sm:$0xf]
  %v261 = vld [vmem:[%s0 + $0x8] sm:$0xf]
  %v262 = vld [vmem:[%s0 + $0xc] sm:$0xf]
  %v263 = vld [vmem:[%s0 + $0x10] sm:$0xf]
  %v264 = vld [vmem:[%s0 + $0x14] sm:$0xf]
  %v265 = vld [vmem:[%s0 + $0x18] sm:$0xf]
  %v266 = vld [vmem:[%s0 + $0x1c] sm:$0xf]
  %v267 = vld [vmem:[%s0 + $0x20] sm:$0xf]
  %v268 = vld [vmem:[%s0 + $0x24] sm:$0xf]
  %v269 = vld [vmem:[%s0 + $0x28] sm:$0xf]
  %v270 = vld [vmem:[%s0 + $0x2c] sm:$0xf]
  %v271 = vld [vmem:[%s0 + $0x30] sm:$0xf]
  %v272 = vld [vmem:[%s0 + $0x34] sm:$0xf]
  %v273 = vld [vmem:[%s0 + $0x38] sm:$0xf]
  %v274 = vld [vmem:[%s0 + $0x3c] sm:$0xf]
  %v275 = vld [vmem:[%s2] sm:$0xf]
  %v276 = vld [vmem:[%s2 + $0x4] sm:$0xf]
  %v277 = vld [vmem:[%s2 + $0x8] sm:$0xf]
  %v278 = vld [vmem:[%s2 + $0xc] sm:$0xf]
  %v279 = vld [vmem:[%s2 + $0x10] sm:$0xf]
  %v280 = vld [vmem:[%s2 + $0x14] sm:$0xf]
  %v281 = vld [vmem:[%s2 + $0x18] sm:$0xf]
  %v282 = vld [vmem:[%s2 + $0x1c] sm:$0xf]
  %v283 = vld [vmem:[%s2 + $0x20] sm:$0xf]
  %v284 = vld [vmem:[%s2 + $0x24] sm:$0xf]
  %v285 = vld [vmem:[%s2 + $0x28] sm:$0xf]
  %v286 = vld [vmem:[%s2 + $0x2c] sm:$0xf]
  %v287 = vld [vmem:[%s2 + $0x30] sm:$0xf]
  %v288 = vld [vmem:[%s2 + $0x34] sm:$0xf]
  %v289 = vld [vmem:[%s2 + $0x38] sm:$0xf]
  %v290 = vld [vmem:[%s2 + $0x3c] sm:$0xf]
  %v307 = vunpack.c.l.b16 %v259
  %v308 = vunpack.c.l.b16 %v260
  %v309 = vunpack.c.l.b16 %v261
  %v310 = vunpack.c.l.b16 %v262
  %v311 = vunpack.c.l.b16 %v263
  %v312 = vunpack.c.l.b16 %v264
  %v313 = vunpack.c.l.b16 %v265
  %v314 = vunpack.c.l.b16 %v266
  %v315 = vunpack.c.l.b16 %v267
  %v316 = vunpack.c.l.b16 %v268
  %v317 = vunpack.c.l.b16 %v269
  %v318 = vunpack.c.l.b16 %v270
  %v319 = vunpack.c.l.b16 %v271
  %v320 = vunpack.c.l.b16 %v272
  %v321 = vunpack.c.l.b16 %v273
  %v322 = vunpack.c.l.b16 %v274
  %v323 = vpack.c.b16 %v308, %v307
  %v324 = vpack.c.b16 %v310, %v309
  %v325 = vpack.c.b16 %v312, %v311
  %v326 = vpack.c.b16 %v314, %v313
  %v327 = vpack.c.b16 %v316, %v315
  %v328 = vpack.c.b16 %v318, %v317
  %v329 = vpack.c.b16 %v320, %v319
  %v330 = vpack.c.b16 %v322, %v321
  %v355 = vunpack.c.l.b16 %v275
  %v356 = vunpack.c.l.b16 %v276
  %v357 = vunpack.c.l.b16 %v277
  %v358 = vunpack.c.l.b16 %v278
  %v359 = vunpack.c.l.b16 %v279
  %v360 = vunpack.c.l.b16 %v280
  %v361 = vunpack.c.l.b16 %v281
  %v362 = vunpack.c.l.b16 %v282
  %v363 = vunpack.c.l.b16 %v283
  %v364 = vunpack.c.l.b16 %v284
  %v365 = vunpack.c.l.b16 %v285
  %v366 = vunpack.c.l.b16 %v286
  %v367 = vunpack.c.l.b16 %v287
  %v368 = vunpack.c.l.b16 %v288
  %v369 = vunpack.c.l.b16 %v289
  %v370 = vunpack.c.l.b16 %v290
  %v371 = vpack.c.b16 %v356, %v355
  %v372 = vpack.c.b16 %v358, %v357
  %v373 = vpack.c.b16 %v360, %v359
  %v374 = vpack.c.b16 %v362, %v361
  %v375 = vpack.c.b16 %v364, %v363
  %v376 = vpack.c.b16 %v366, %v365
  %v377 = vpack.c.b16 %v368, %v367
  %v378 = vpack.c.b16 %v370, %v369
  %387 = vmatpush.bf16.msra.mxu0 %v378
  %388 = vmatpush.bf16.msra.mxu0 %v377
  %389 = vmatpush.bf16.msra.mxu0 %v376
  %390 = vmatpush.bf16.msra.mxu0 %v375
  %391 = vmatpush.bf16.msra.mxu0 %v374
  %392 = vmatpush.bf16.msra.mxu0 %v373
  %393 = vmatpush.bf16.msra.mxu0 %v372
  %394 = vmatpush.bf16.msra.mxu0 %v371
  %395 = vmatmul.bf16.gmra.mxu0 %v323
  %v396 = vpop.f32.mrf.mxu0
  %v397 = vadd.f32 0.0, %v396
  %v398 = vpop.f32.mrf.mxu0
  %v399 = vadd.f32 0.0, %v398
  %400 = vmatmul.bf16.gmra.mxu0 %v324
  %v401 = vpop.f32.mrf.mxu0
  %v402 = vadd.f32 0.0, %v401
  %v403 = vpop.f32.mrf.mxu0
  %v404 = vadd.f32 0.0, %v403
  %405 = vmatmul.bf16.gmra.mxu0 %v325
  %v406 = vpop.f32.mrf.mxu0
  %v407 = vadd.f32 0.0, %v406
  %v408 = vpop.f32.mrf.mxu0
  %v409 = vadd.f32 0.0, %v408
  %410 = vmatmul.bf16.gmra.mxu0 %v326
  %v411 = vpop.f32.mrf.mxu0
  %v412 = vadd.f32 0.0, %v411
  %v413 = vpop.f32.mrf.mxu0
  %v414 = vadd.f32 0.0, %v413
  %415 = vmatmul.bf16.gmra.mxu0 %v327
  %v416 = vpop.f32.mrf.mxu0
  %v417 = vadd.f32 0.0, %v416
  %v418 = vpop.f32.mrf.mxu0
  %v419 = vadd.f32 0.0, %v418
  %420 = vmatmul.bf16.gmra.mxu0 %v328
  %v421 = vpop.f32.mrf.mxu0
  %v422 = vadd.f32 0.0, %v421
  %v423 = vpop.f32.mrf.mxu0
  %v424 = vadd.f32 0.0, %v423
  %425 = vmatmul.bf16.gmra.mxu0 %v329
  %v426 = vpop.f32.mrf.mxu0
  %v427 = vadd.f32 0.0, %v426
  %v428 = vpop.f32.mrf.mxu0
  %v429 = vadd.f32 0.0, %v428
  %430 = vmatmul.bf16.gmra.mxu0 %v330
  %v431 = vpop.f32.mrf.mxu0
  %v432 = vadd.f32 0.0, %v431
  %v433 = vpop.f32.mrf.mxu0
  %v434 = vadd.f32 0.0, %v433
  %435 = vdwg.mxu0
  %v436 = vadd.f32 %v243, %v397
  %v437 = vadd.f32 %v244, %v399
  %v438 = vadd.f32 %v245, %v402
  %v439 = vadd.f32 %v246, %v404
  %v440 = vadd.f32 %v247, %v407
  %v441 = vadd.f32 %v248, %v409
  %v442 = vadd.f32 %v249, %v412
  %v443 = vadd.f32 %v250, %v414
  %v444 = vadd.f32 %v251, %v417
  %v445 = vadd.f32 %v252, %v419
  %v446 = vadd.f32 %v253, %v422
  %v447 = vadd.f32 %v254, %v424
  %v448 = vadd.f32 %v255, %v427
  %v449 = vadd.f32 %v256, %v429
  %v450 = vadd.f32 %v257, %v432
  %v451 = vadd.f32 %v258, %v434
  %452 = vst [vmem:[#allocation2] sm:$0xff] %v436
  %453 = vst [vmem:[#allocation2 + $0x8] sm:$0xff] %v437
  %454 = vst [vmem:[#allocation2 + $0x10] sm:$0xff] %v438
  %455 = vst [vmem:[#allocation2 + $0x18] sm:$0xff] %v439
  %456 = vst [vmem:[#allocation2 + $0x20] sm:$0xff] %v440
  %457 = vst [vmem:[#allocation2 + $0x28] sm:$0xff] %v441
  %458 = vst [vmem:[#allocation2 + $0x30] sm:$0xff] %v442
  %459 = vst [vmem:[#allocation2 + $0x38] sm:$0xff] %v443
  %460 = vst [vmem:[#allocation2 + $0x40] sm:$0xff] %v444
  %461 = vst [vmem:[#allocation2 + $0x48] sm:$0xff] %v445
  %462 = vst [vmem:[#allocation2 + $0x50] sm:$0xff] %v446
  %463 = vst [vmem:[#allocation2 + $0x58] sm:$0xff] %v447
  %464 = vst [vmem:[#allocation2 + $0x60] sm:$0xff] %v448
  %465 = vst [vmem:[#allocation2 + $0x68] sm:$0xff] %v449
  %466 = vst [vmem:[#allocation2 + $0x70] sm:$0xff] %v450
  %467 = vst [vmem:[#allocation2 + $0x78] sm:$0xff] %v451
  // Predicated region
  $region34: #{encoder_forward.1} parent=0 // pred_check
    %p468 = pneg %p26
  $region35: #{encoder_forward.1} parent=0 // pred_check_branch
    %470 = sbr.rel (%p468) target = $region37
  $region36: #{encoder_forward.1} parent=0 // pred_region
    %v471 = vld [vmem:[#allocation2] sm:$0xff]
    %v472 = vld [vmem:[#allocation2 + $0x8] sm:$0xff]
    %v473 = vld [vmem:[#allocation2 + $0x10] sm:$0xff]
    %v474 = vld [vmem:[#allocation2 + $0x18] sm:$0xff]
    %v475 = vld [vmem:[#allocation2 + $0x20] sm:$0xff]
    %v476 = vld [vmem:[#allocation2 + $0x28] sm:$0xff]
    %v477 = vld [vmem:[#allocation2 + $0x30] sm:$0xff]
    %v478 = vld [vmem:[#allocation2 + $0x38] sm:$0xff]
    %v479 = vld [vmem:[#allocation2 + $0x40] sm:$0xff]
    %v480 = vld [vmem:[#allocation2 + $0x48] sm:$0xff]
    %v481 = vld [vmem:[#allocation2 + $0x50] sm:$0xff]
    %v482 = vld [vmem:[#allocation2 + $0x58] sm:$0xff]
    %v483 = vld [vmem:[#allocation2 + $0x60] sm:$0xff]
    %v484 = vld [vmem:[#allocation2 + $0x68] sm:$0xff]
    %v485 = vld [vmem:[#allocation2 + $0x70] sm:$0xff]
    %v486 = vld [vmem:[#allocation2 + $0x78] sm:$0xff]
    %v487 = vld [vmem:[%s1] sm:$0xff]
    %v488 = vld [vmem:[%s1 + $0x8] sm:$0xff]
    %v489 = vld [vmem:[%s1 + $0x10] sm:$0xff]
    %v490 = vld [vmem:[%s1 + $0x18] sm:$0xff]
    %v491 = vld [vmem:[%s1 + $0x20] sm:$0xff]
    %v492 = vld [vmem:[%s1 + $0x28] sm:$0xff]
    %v493 = vld [vmem:[%s1 + $0x30] sm:$0xff]
    %v494 = vld [vmem:[%s1 + $0x38] sm:$0xff]
    %v495 = vld [vmem:[%s1 + $0x40] sm:$0xff]
    %v496 = vld [vmem:[%s1 + $0x48] sm:$0xff]
    %v497 = vld [vmem:[%s1 + $0x50] sm:$0xff]
    %v498 = vld [vmem:[%s1 + $0x58] sm:$0xff]
    %v499 = vld [vmem:[%s1 + $0x60] sm:$0xff]
    %v500 = vld [vmem:[%s1 + $0x68] sm:$0xff]
    %v501 = vld [vmem:[%s1 + $0x70] sm:$0xff]
    %v502 = vld [vmem:[%s1 + $0x78] sm:$0xff]
    %504 = vset.pattern.permute.xlu0 0
    %505 = vperm.xlu0 %504, %v487
    %v506 = vpop.permute.xlu0 %505
    %509 = vset.pattern.permute.xlu0 0
    %510 = vperm.xlu0 %509, %v488
    %v511 = vpop.permute.xlu0 %510
    %514 = vset.pattern.permute.xlu0 0
    %515 = vperm.xlu0 %514, %v489
    %v516 = vpop.permute.xlu0 %515
    %519 = vset.pattern.permute.xlu0 0
    %520 = vperm.xlu0 %519, %v490
    %v521 = vpop.permute.xlu0 %520
    %524 = vset.pattern.permute.xlu0 0
    %525 = vperm.xlu0 %524, %v491
    %v526 = vpop.permute.xlu0 %525
    %529 = vset.pattern.permute.xlu0 0
    %530 = vperm.xlu0 %529, %v492
    %v531 = vpop.permute.xlu0 %530
    %534 = vset.pattern.permute.xlu0 0
    %535 = vperm.xlu0 %534, %v493
    %v536 = vpop.permute.xlu0 %535
    %539 = vset.pattern.permute.xlu0 0
    %540 = vperm.xlu0 %539, %v494
    %v541 = vpop.permute.xlu0 %540
    %544 = vset.pattern.permute.xlu0 0
    %545 = vperm.xlu0 %544, %v495
    %v546 = vpop.permute.xlu0 %545
    %549 = vset.pattern.permute.xlu0 0
    %550 = vperm.xlu0 %549, %v496
    %v551 = vpop.permute.xlu0 %550
    %554 = vset.pattern.permute.xlu0 0
    %555 = vperm.xlu0 %554, %v497
    %v556 = vpop.permute.xlu0 %555
    %559 = vset.pattern.permute.xlu0 0
    %560 = vperm.xlu0 %559, %v498
    %v561 = vpop.permute.xlu0 %560
    %564 = vset.pattern.permute.xlu0 0
    %565 = vperm.xlu0 %564, %v499
    %v566 = vpop.permute.xlu0 %565
    %569 = vset.pattern.permute.xlu0 0
    %570 = vperm.xlu0 %569, %v500
    %v571 = vpop.permute.xlu0 %570
    %574 = vset.pattern.permute.xlu0 0
    %575 = vperm.xlu0 %574, %v501
    %v576 = vpop.permute.xlu0 %575
    %579 = vset.pattern.permute.xlu0 0
    %580 = vperm.xlu0 %579, %v502
    %v581 = vpop.permute.xlu0 %580
    %v583 = vmul.f32 %v471, %v506
    %v584 = vmul.f32 %v472, %v511
    %v585 = vmul.f32 %v473, %v516
    %v586 = vmul.f32 %v474, %v521
    %v587 = vmul.f32 %v475, %v526
    %v588 = vmul.f32 %v476, %v531
    %v589 = vmul.f32 %v477, %v536
    %v590 = vmul.f32 %v478, %v541
    %v591 = vmul.f32 %v479, %v546
    %v592 = vmul.f32 %v480, %v551
    %v593 = vmul.f32 %v481, %v556
    %v594 = vmul.f32 %v482, %v561
    %v595 = vmul.f32 %v483, %v566
    %v596 = vmul.f32 %v484, %v571
    %v597 = vmul.f32 %v485, %v576
    %v598 = vmul.f32 %v486, %v581
    %v599 = vpack.c.bf16 %v584, %v583
    %v600 = vpack.c.bf16 %v586, %v585
    %v601 = vpack.c.bf16 %v588, %v587
    %v602 = vpack.c.bf16 %v590, %v589
    %v603 = vpack.c.bf16 %v592, %v591
    %v604 = vpack.c.bf16 %v594, %v593
    %v605 = vpack.c.bf16 %v596, %v595
    %v606 = vpack.c.bf16 %v598, %v597
    %v607 = vld [vmem:[%s7] sm:$0xff]
    %v608 = vld [vmem:[%s7 + $0x8] sm:$0xff]
    %v609 = vld [vmem:[%s7 + $0x10] sm:$0xff]
    %v610 = vld [vmem:[%s7 + $0x18] sm:$0xff]
    %v611 = vld [vmem:[%s7 + $0x20] sm:$0xff]
    %v612 = vld [vmem:[%s7 + $0x28] sm:$0xff]
    %v613 = vld [vmem:[%s7 + $0x30] sm:$0xff]
    %v614 = vld [vmem:[%s7 + $0x38] sm:$0xff]
    %v615 = vld [vmem:[%s7 + $0x40] sm:$0xff]
    %v616 = vld [vmem:[%s7 + $0x48] sm:$0xff]
    %v617 = vld [vmem:[%s7 + $0x50] sm:$0xff]
    %v618 = vld [vmem:[%s7 + $0x58] sm:$0xff]
    %v619 = vld [vmem:[%s7 + $0x60] sm:$0xff]
    %v620 = vld [vmem:[%s7 + $0x68] sm:$0xff]
    %v621 = vld [vmem:[%s7 + $0x70] sm:$0xff]
    %v622 = vld [vmem:[%s7 + $0x78] sm:$0xff]
    %v623 = vld [vmem:[%s5] sm:$0xf]
    %v624 = vld [vmem:[%s5 + $0x4] sm:$0xf]
    %v625 = vld [vmem:[%s5 + $0x8] sm:$0xf]
    %v626 = vld [vmem:[%s5 + $0xc] sm:$0xf]
    %v627 = vld [vmem:[%s5 + $0x10] sm:$0xf]
    %v628 = vld [vmem:[%s5 + $0x14] sm:$0xf]
    %v629 = vld [vmem:[%s5 + $0x18] sm:$0xf]
    %v630 = vld [vmem:[%s5 + $0x1c] sm:$0xf]
    %v631 = vld [vmem:[%s5 + $0x20] sm:$0xf]
    %v632 = vld [vmem:[%s5 + $0x24] sm:$0xf]
    %v633 = vld [vmem:[%s5 + $0x28] sm:$0xf]
    %v634 = vld [vmem:[%s5 + $0x2c] sm:$0xf]
    %v635 = vld [vmem:[%s5 + $0x30] sm:$0xf]
    %v636 = vld [vmem:[%s5 + $0x34] sm:$0xf]
    %v637 = vld [vmem:[%s5 + $0x38] sm:$0xf]
    %v638 = vld [vmem:[%s5 + $0x3c] sm:$0xf]
    %v655 = vunpack.c.l.b16 %v623
    %v656 = vunpack.c.l.b16 %v624
    %v657 = vunpack.c.l.b16 %v625
    %v658 = vunpack.c.l.b16 %v626
    %v659 = vunpack.c.l.b16 %v627
    %v660 = vunpack.c.l.b16 %v628
    %v661 = vunpack.c.l.b16 %v629
    %v662 = vunpack.c.l.b16 %v630
    %v663 = vunpack.c.l.b16 %v631
    %v664 = vunpack.c.l.b16 %v632
    %v665 = vunpack.c.l.b16 %v633
    %v666 = vunpack.c.l.b16 %v634
    %v667 = vunpack.c.l.b16 %v635
    %v668 = vunpack.c.l.b16 %v636
    %v669 = vunpack.c.l.b16 %v637
    %v670 = vunpack.c.l.b16 %v638
    %v671 = vpack.c.b16 %v656, %v655
    %v672 = vpack.c.b16 %v658, %v657
    %v673 = vpack.c.b16 %v660, %v659
    %v674 = vpack.c.b16 %v662, %v661
    %v675 = vpack.c.b16 %v664, %v663
    %v676 = vpack.c.b16 %v666, %v665
    %v677 = vpack.c.b16 %v668, %v667
    %v678 = vpack.c.b16 %v670, %v669
    %687 = vmatpush.bf16.msra.mxu0 %v678
    %688 = vmatpush.bf16.msra.mxu0 %v677
    %689 = vmatpush.bf16.msra.mxu0 %v676
    %690 = vmatpush.bf16.msra.mxu0 %v675
    %691 = vmatpush.bf16.msra.mxu0 %v674
    %692 = vmatpush.bf16.msra.mxu0 %v673
    %693 = vmatpush.bf16.msra.mxu0 %v672
    %694 = vmatpush.bf16.msra.mxu0 %v671
    %695 = vmatmul.bf16.gmra.mxu0 %v599
    %v696 = vpop.f32.mrf.mxu0
    %v697 = vadd.f32 0.0, %v696
    %v698 = vpop.f32.mrf.mxu0
    %v699 = vadd.f32 0.0, %v698
    %700 = vmatmul.bf16.gmra.mxu0 %v600
    %v701 = vpop.f32.mrf.mxu0
    %v702 = vadd.f32 0.0, %v701
    %v703 = vpop.f32.mrf.mxu0
    %v704 = vadd.f32 0.0, %v703
    %705 = vmatmul.bf16.gmra.mxu0 %v601
    %v706 = vpop.f32.mrf.mxu0
    %v707 = vadd.f32 0.0, %v706
    %v708 = vpop.f32.mrf.mxu0
    %v709 = vadd.f32 0.0, %v708
    %710 = vmatmul.bf16.gmra.mxu0 %v602
    %v711 = vpop.f32.mrf.mxu0
    %v712 = vadd.f32 0.0, %v711
    %v713 = vpop.f32.mrf.mxu0
    %v714 = vadd.f32 0.0, %v713
    %715 = vmatmul.bf16.gmra.mxu0 %v603
    %v716 = vpop.f32.mrf.mxu0
    %v717 = vadd.f32 0.0, %v716
    %v718 = vpop.f32.mrf.mxu0
    %v719 = vadd.f32 0.0, %v718
    %720 = vmatmul.bf16.gmra.mxu0 %v604
    %v721 = vpop.f32.mrf.mxu0
    %v722 = vadd.f32 0.0, %v721
    %v723 = vpop.f32.mrf.mxu0
    %v724 = vadd.f32 0.0, %v723
    %725 = vmatmul.bf16.gmra.mxu0 %v605
    %v726 = vpop.f32.mrf.mxu0
    %v727 = vadd.f32 0.0, %v726
    %v728 = vpop.f32.mrf.mxu0
    %v729 = vadd.f32 0.0, %v728
    %730 = vmatmul.bf16.gmra.mxu0 %v606
    %v731 = vpop.f32.mrf.mxu0
    %v732 = vadd.f32 0.0, %v731
    %v733 = vpop.f32.mrf.mxu0
    %v734 = vadd.f32 0.0, %v733
    %735 = vdwg.mxu0
    %v736 = vadd.f32 %v607, %v697
    %v737 = vadd.f32 %v608, %v699
    %v738 = vadd.f32 %v609, %v702
    %v739 = vadd.f32 %v610, %v704
    %v740 = vadd.f32 %v611, %v707
    %v741 = vadd.f32 %v612, %v709
    %v742 = vadd.f32 %v613, %v712
    %v743 = vadd.f32 %v614, %v714
    %v744 = vadd.f32 %v615, %v717
    %v745 = vadd.f32 %v616, %v719
    %v746 = vadd.f32 %v617, %v722
    %v747 = vadd.f32 %v618, %v724
    %v748 = vadd.f32 %v619, %v727
    %v749 = vadd.f32 %v620, %v729
    %v750 = vadd.f32 %v621, %v732
    %v751 = vadd.f32 %v622, %v734
    %v752 = vmax.f32 %v736, 0.0
    %v753 = vmax.f32 %v737, 0.0
    %v754 = vmax.f32 %v738, 0.0
    %v755 = vmax.f32 %v739, 0.0
    %v756 = vmax.f32 %v740, 0.0
    %v757 = vmax.f32 %v741, 0.0
    %v758 = vmax.f32 %v742, 0.0
    %v759 = vmax.f32 %v743, 0.0
    %v760 = vmax.f32 %v744, 0.0
    %v761 = vmax.f32 %v745, 0.0
    %v762 = vmax.f32 %v746, 0.0
    %v763 = vmax.f32 %v747, 0.0
    %v764 = vmax.f32 %v748, 0.0
    %v765 = vmax.f32 %v749, 0.0
    %v766 = vmax.f32 %v750, 0.0
    %v767 = vmax.f32 %v751, 0.0
    %768 = vst [vmem:[%s7] sm:$0xff] %v752
    %769 = vst [vmem:[%s7 + $0x8] sm:$0xff] %v753
    %770 = vst [vmem:[%s7 + $0x10] sm:$0xff] %v754
    %771 = vst [vmem:[%s7 + $0x18] sm:$0xff] %v755
    %772 = vst [vmem:[%s7 + $0x20] sm:$0xff] %v756
    %773 = vst [vmem:[%s7 + $0x28] sm:$0xff] %v757
    %774 = vst [vmem:[%s7 + $0x30] sm:$0xff] %v758
    %775 = vst [vmem:[%s7 + $0x38] sm:$0xff] %v759
    %776 = vst [vmem:[%s7 + $0x40] sm:$0xff] %v760
    %777 = vst [vmem:[%s7 + $0x48] sm:$0xff] %v761
    %778 = vst [vmem:[%s7 + $0x50] sm:$0xff] %v762
    %779 = vst [vmem:[%s7 + $0x58] sm:$0xff] %v763
    %780 = vst [vmem:[%s7 + $0x60] sm:$0xff] %v764
    %781 = vst [vmem:[%s7 + $0x68] sm:$0xff] %v765
    %782 = vst [vmem:[%s7 + $0x70] sm:$0xff] %v766
    %783 = vst [vmem:[%s7 + $0x78] sm:$0xff] %v767
  $region37: #{encoder_forward.1} parent=0 // pred_fallthru
    _
  // Predicated region
  $region38: #{encoder_forward.1} parent=0 // pred_check
    _
  $region39: #{encoder_forward.1} parent=0 // pred_check_branch
    %785 = sbr.rel (0) target = $region41
  $region40: #{encoder_forward.1} parent=0 // pred_region
    _
  $region41: #{encoder_forward.1} parent=0 // pred_fallthru
    _
  // Predicated region
  $region42: #{encoder_forward.1} parent=0 // pred_check
    _
  $region43: #{encoder_forward.1} parent=0 // pred_check_branch
    %787 = sbr.rel (0) target = $region45
  $region44: #{encoder_forward.1} parent=0 // pred_region
    _
  $region45: #{encoder_forward.1} parent=0 // pred_fallthru
    _

</llo_original>
